<compile_context>
chip_gen: v5e
topology: v5e:2x2
jax: 0.10.0
libtpu: 0.0.40
codegen_flags: <defaults>
</compile_context>

<pallas_src>
import math

import jax
import jax.numpy as jnp
from jax.experimental import pallas as pl
from jax.experimental.pallas import tpu as pltpu

# Chunk the copy into at most this many concurrent DMAs...
_MAX_DMA_CHUNKS = 4
# ...but only once each chunk moves at least this many bytes (below that, a
# single DMA descriptor is already optimal and extra descriptors are pure
# overhead).
_MIN_BYTES_PER_CHUNK = 64 * 1024


def null_encoder_layer(src: jnp.ndarray) -> jnp.ndarray:
    """NullEncoderLayer.forward: out = src. Identity — no kernel, no traffic."""
    return src


def _make_hbm_copy_kernel(chunks):
    """Build a kernel that DMAs src -> out directly in HBM.

    `chunks` is either None (single whole-array DMA) or a tuple of static
    (offset, size) pairs along the leading axis.  All DMAs are started before
    any wait so the read/write queues overlap.
    """

    def kernel(src_ref, out_ref, sems):
        copies = []
        if chunks is None:
            cp = pltpu.make_async_copy(src_ref, out_ref, sems.at[0])
            cp.start()
            copies.append(cp)
        else:
            for i, (off, size) in enumerate(chunks):
                cp = pltpu.make_async_copy(
                    src_ref.at[pl.ds(off, size)],
                    out_ref.at[pl.ds(off, size)],
                    sems.at[i],
                )
                cp.start()
                copies.append(cp)
        for cp in copies:
            cp.wait()

    return kernel


def null_encoder_layer_materialize(src: jnp.ndarray) -> jnp.ndarray:
    """Identity forward that materializes a fresh output buffer via a direct
    HBM -> HBM DMA (no VMEM staging, no tiling constraints)."""
    shape = src.shape
    dtype = src.dtype
    total_bytes = math.prod(shape) * jnp.dtype(dtype).itemsize if shape else jnp.dtype(dtype).itemsize

    # Static chunking decision (trace-time Python): split along the leading
    # axis into 2-4 DMAs only when each chunk is >= _MIN_BYTES_PER_CHUNK.
    lead = shape[0] if len(shape) > 0 else 1
    n_chunks = 1
    if len(shape) > 0 and total_bytes >= 2 * _MIN_BYTES_PER_CHUNK:
        n_chunks = int(min(_MAX_DMA_CHUNKS, lead, total_bytes // _MIN_BYTES_PER_CHUNK))
        n_chunks = max(1, n_chunks)

    if n_chunks <= 1:
        chunks = None
        n_sems = 1
    else:
        base = -(-lead // n_chunks)  # ceil-divide: near-equal chunks, static tail
        chunk_list = []
        off = 0
        while off < lead:
            size = min(base, lead - off)
            chunk_list.append((off, size))
            off += size
        chunks = tuple(chunk_list)
        n_sems = len(chunks)

    kernel = _make_hbm_copy_kernel(chunks)
    return pl.pallas_call(
        kernel,
        out_shape=jax.ShapeDtypeStruct(shape, dtype),
        in_specs=[pl.BlockSpec(memory_space=pl.ANY)],
        out_specs=pl.BlockSpec(memory_space=pl.ANY),
        scratch_shapes=[pltpu.SemaphoreType.DMA((n_sems,))],
    )(src)


if __name__ == "__main__":
    key = jax.random.PRNGKey(0)
    k1, k2, k3 = jax.random.split(key, 3)

    # Shapes consistent with the module's [B, N, D] contract.
    B, N, D = 2, 8, 32
    src = jax.random.normal(k1, (B, N, D), dtype=jnp.float32)

    # 1) The real forward: identity, zero cost.
    out = null_encoder_layer(src)
    assert out.shape == src.shape and out.dtype == src.dtype
    assert bool(jnp.array_equal(out, src))

    # 2) Materializing copy on the small [B, N, D] input:
    #    single whole-array HBM->HBM DMA.
    out_copy = jax.block_until_ready(null_encoder_layer_materialize(src))
    assert out_copy.shape == src.shape and out_copy.dtype == src.dtype
    assert bool(jnp.array_equal(out_copy, src))

    # 3) A bigger slab (128 KiB) that exercises the 2-chunk overlapped-DMA path.
    src_big = jax.random.normal(k2, (4, 64, 128), dtype=jnp.float32)
    out_big = jax.block_until_ready(null_encoder_layer_materialize(src_big))
    assert out_big.shape == src_big.shape and out_big.dtype == src_big.dtype
    assert bool(jnp.array_equal(out_big, src_big))

    # 4) Odd shape + bf16: no VMEM staging means no (8,128) / packing / VMEM
    #    budget concerns — the old whole-array-in-VMEM fallback is gone.
    src_odd = jax.random.normal(k3, (2, 7, 33), dtype=jnp.bfloat16)
    out_odd = jax.block_until_ready(null_encoder_layer_materialize(src_odd))
    assert out_odd.shape == src_odd.shape and out_odd.dtype == src_odd.dtype
    assert bool(jnp.array_equal(out_odd, src_odd))

    print("KERNEL_OK")
</pallas_src>

<mosaic_0001>
module attributes {stable_mosaic.version = 11 : i64} {
  func.func @kernel(%arg0: memref<2x8x32xf32, #tpu.memory_space<any>>, %arg1: memref<2x8x32xf32, #tpu.memory_space<any>>, %arg2: memref<1x!tpu.dma_semaphore, #tpu.memory_space<semaphore_mem>>) attributes {dimension_semantics = [], scalar_prefetch = 0 : i64, scratch_operands = 1 : i64, tpu.core_type = #tpu.core_type<tc>} {
    %c0_i32 = arith.constant 0 : i32
    %0 = tpu.memref_slice %arg2[%c0_i32] : memref<1x!tpu.dma_semaphore, #tpu.memory_space<semaphore_mem>> -> memref<1x!tpu.dma_semaphore, #tpu.memory_space<semaphore_mem>>
    %1 = tpu.memref_squeeze %0 : memref<1x!tpu.dma_semaphore, #tpu.memory_space<semaphore_mem>> -> memref<!tpu.dma_semaphore, #tpu.memory_space<semaphore_mem>>
    tpu.enqueue_dma source(%arg0 : memref<2x8x32xf32, #tpu.memory_space<any>>) target(%arg1 : memref<2x8x32xf32, #tpu.memory_space<any>>) target_semaphore(%1 : memref<!tpu.dma_semaphore, #tpu.memory_space<semaphore_mem>>)
    %c0_i32_0 = arith.constant 0 : i32
    %2 = tpu.memref_slice %arg2[%c0_i32_0] : memref<1x!tpu.dma_semaphore, #tpu.memory_space<semaphore_mem>> -> memref<1x!tpu.dma_semaphore, #tpu.memory_space<semaphore_mem>>
    %3 = tpu.memref_squeeze %2 : memref<1x!tpu.dma_semaphore, #tpu.memory_space<semaphore_mem>> -> memref<!tpu.dma_semaphore, #tpu.memory_space<semaphore_mem>>
    tpu.wait_dma2 semaphore(%3 : memref<!tpu.dma_semaphore, #tpu.memory_space<semaphore_mem>>) src(%arg0 : memref<2x8x32xf32, #tpu.memory_space<any>>) dst(%arg1 : memref<2x8x32xf32, #tpu.memory_space<any>>)
    return
  }
}

</mosaic_0001>

<llo_original>
// kernel: tpu_custom_call.1
$region0: #{tpu_custom_call.1}
  #allocation0 [shape = 'u32[]', space=smem, size = 0x4, offset = 0x4, fixed_abs, tag = 'smem constant byte address 0x4 - core index']
  #allocation1 [shape = 'u32[72,128]{1,0:T(1,128)}', space=vmem, size = 0x9000, scoped, tag = 'internal scratch']
  #allocation2 [shape = 's32[1]{0}', space=sflag, size = 0x4, scoped, tag = 'scratch operand']
  #allocation3 [shape = 's32[]', space=sflag, size = 0x4, offset = 0, fixed_abs, tag = 'sflag constant byte address 0x0 - dummy sync flag']
  #allocation4 [shape = 'u32[0]{0}', space=smem, size = 0, offset = 0, fixed_abs, tag = 'smem constant byte address 0x0 - null']
  %s0 = inlined_call_operand.hbm [shape: f32[2,8,32], index: 0, kind: input, shape index: {}]
  %s1 = inlined_call_operand.hbm [shape: f32[2,8,32], index: 1, kind: output, shape index: {}]
  %s2 = sld [smem:[#allocation0]]
  $region2: #{tpu_custom_call.1} parent=0
    _
  %s4 = ssub.s32 1, %s2
  %s5 = scalar_select 0, %s4, %s2
  %s7 = sshll.u32 1, 14
  %s8 = sxor.u32 4294967295, %s7
  %s10 = sshll.u32 %s0, 4
  %s11 = int_to_ptr.hbm [resolvable:$true] %s10
  %s12 = sshll.u32 %s1, 4
  %s13 = int_to_ptr.hbm [resolvable:$true] %s12
  %16 = dma.general %s11, 256, %s13, [#allocation2], [#allocation3], [#allocation4], 0, 0
  %s17 = smul.u32 2, 8
  %s18 = smul.u32 %s17, 1
  %s19 = sshll.u32 %s18, 4
  %20 = dma.done [#allocation2], %s19
  %21 = vsyncmov [#allocation2]
  %s22 = vpop.sfrf %21
  %p23 = scmp.eq.s32.totalorder %s22, 0
  %p24 = pneg %p23
  %26 = shalt.err (%p24)

</llo_original>
